<compile_context>
chip_gen: v7x
topology: tpu7x:2x2x1
jax: 0.10.0
libtpu: 0.0.40
codegen_flags: <defaults>
</compile_context>

<pallas_src>
import functools
import math

import jax
import jax.numpy as jnp
import numpy as np
from jax.experimental import pallas as pl
from jax.experimental.pallas import tpu as pltpu

_SEED_ROWS = 32                       # rows computed exactly (EUP) per re-seed
_RESEED_EVERY = 8                     # rotation steps between exact re-seeds
_CHUNK_ROWS = _SEED_ROWS * _RESEED_EVERY
_TARGET_TILE_BYTES = 4 * 1024 * 1024  # 2x4 MiB double-buffered fits v5e scoped VMEM


def _cdiv(a: int, b: int) -> int:
    return -(-a // b)


def _round_up(a: int, b: int) -> int:
    return _cdiv(a, b) * b


def _pos_embedding_kernel(params_ref, o_ref, *, per_row: int):
    """Writes one (tile_rows, lane_w) tile of the flattened sinusoidal table.

    The row-major (max_len, d_model) table is viewed as (rows, lane_w) with
    lane_w covering `per_row` consecutive positions per flat row, so frequency,
    phase and position-offset depend only on the lane (precomputed in params).
    """
    tile_rows, lane_w = o_ref.shape
    n_chunks = tile_rows // _CHUNK_ROWS

    prm = params_ref[...]                    # (8, lane_w), loaded once per tile
    freq = prm[0:1, :]                       # den value per lane
    phase = prm[1:2, :]                      # 0 or pi/2 (odd columns)
    pos_ofs = prm[2:3, :]                    # lane // d_model, as exact f32 int
    cos_d = prm[3:4, :]                      # cos(SEED_ROWS * per_row * freq)
    sin_d = prm[4:5, :]                      # sin(SEED_ROWS * per_row * freq)

    r_iota = jax.lax.broadcasted_iota(jnp.int32, (_SEED_ROWS, lane_w), 0)
    row0 = pl.program_id(0) * tile_rows

    @pl.loop(0, n_chunks)
    def _(ci):
        local0 = ci * _CHUNK_ROWS
        # Exact seed block: pos is an exact f32 integer, theta matches the
        # reference construction's f32 rounding (pos * den).
        pos = ((row0 + local0 + r_iota) * per_row).astype(jnp.float32) + pos_ofs
        theta = pos * freq + phase
        s = jnp.sin(theta)                   # EUP — only the seed rows hit the EUP
        c = jnp.cos(theta)
        for k in range(_RESEED_EVERY):       # static unroll: 8 blocks per chunk
            start = pl.multiple_of(local0 + k * _SEED_ROWS, _SEED_ROWS)
            o_ref[pl.ds(start, _SEED_ROWS), :] = s
            if k + 1 < _RESEED_EVERY:
                # Advance all lanes by SEED_ROWS flat rows: pure VPU 2x2 rotation.
                s, c = s * cos_d + c * sin_d, c * cos_d - s * sin_d


@functools.lru_cache(maxsize=None)
def _pos_embedding_table(d_model: int, max_len: int) -> jax.Array:
    """Builds the (max_len, 1, d_model) sinusoidal table once (cached)."""
    assert d_model % 2 == 0, "sinusoidal PE requires an even d_model"
    total = max_len * d_model

    # ---- lane-dense layout selection -------------------------------------
    if d_model % 128 == 0:
        lane_w, per_row, padded = d_model, 1, False
    else:
        lcm = d_model * 128 // math.gcd(d_model, 128)
        if lcm <= 512 and total % lcm == 0:
            lane_w, per_row, padded = lcm, lcm // d_model, False
        else:
            # Padded slab: full-width (multiple-of-128) stores, wrapper slices cols.
            lane_w, per_row, padded = _round_up(d_model, 128), 1, True
    rows_total = max_len if padded else total // lane_w

    # ---- per-lane constants (host-side; no in-kernel div/mod/exp) ---------
    lane = np.arange(lane_w)
    col = lane % d_model
    den = np.exp(-(col & ~1).astype(np.float64) * (math.log(10000.0) / d_model)).astype(np.float32)
    phase = ((col & 1).astype(np.float64) * (math.pi / 2.0)).astype(np.float32)
    pos_ofs = (lane // d_model).astype(np.float32)
    # Rotation constants derived from the *f32* den so the recurrence advances the
    # exact same per-lane frequency the seed used; computed in f64 for accuracy.
    delta = den.astype(np.float64) * float(_SEED_ROWS * per_row)
    params = np.zeros((8, lane_w), dtype=np.float32)
    params[0], params[1], params[2] = den, phase, pos_ofs
    params[3] = np.cos(delta).astype(np.float32)
    params[4] = np.sin(delta).astype(np.float32)
    params = jnp.asarray(params)

    # ---- tiling ------------------------------------------------------------
    bytes_per_row = lane_w * 4
    target_rows = max(_CHUNK_ROWS,
                      _TARGET_TILE_BYTES // bytes_per_row // _CHUNK_ROWS * _CHUNK_ROWS)
    tile_rows = min(target_rows, _round_up(rows_total, _CHUNK_ROWS))
    if rows_total >= 2 * _CHUNK_ROWS and _cdiv(rows_total, tile_rows) < 2:
        # v7x: ensure >= 2 blocks so the "parallel" axis shards across both cores.
        tile_rows = _round_up(_cdiv(rows_total, 2), _CHUNK_ROWS)
    rows_padded = _round_up(rows_total, tile_rows)   # whole tiles only; pad rows are sliced off
    grid = (rows_padded // tile_rows,)

    kernel = functools.partial(_pos_embedding_kernel, per_row=per_row)
    flat = pl.pallas_call(
        kernel,
        out_shape=jax.ShapeDtypeStruct((rows_padded, lane_w), jnp.float32),
        grid=grid,
        in_specs=[pl.BlockSpec((8, lane_w), lambda i: (0, 0))],
        out_specs=pl.BlockSpec((tile_rows, lane_w), lambda i: (i, 0)),
        compiler_params=pltpu.CompilerParams(
            dimension_semantics=("parallel",),
        ),
    )(params)

    if padded:
        pe = flat[:max_len, :d_model]
    else:
        pe = flat.reshape(-1)[:total].reshape(max_len, d_model)
    # Match torch buffer layout (max_len, 1, d_model).
    return pe[:, None, :]


def position_embedding_forward(x: jax.Array, d_model: int, max_len: int = 5000) -> jax.Array:
    """Equivalent of PositionEmbedding(d_model, max_len).forward(x) -> (seq, 1, d_model)."""
    seq = x.shape[-2]
    assert 0 < seq <= max_len, "requested length exceeds max_len"
    table = _pos_embedding_table(d_model, max_len)   # built once, cached (like register_buffer)
    return table[:seq]


def _reference(seq: int, d_model: int) -> jnp.ndarray:
    """Pure-JAX reference mirroring the PyTorch __init__ construction."""
    den = jnp.exp(-jnp.arange(0, d_model, 2, dtype=jnp.float32) * math.log(10000.0) / d_model)
    pos = jnp.arange(0, seq, dtype=jnp.float32).reshape(seq, 1)
    pe = jnp.zeros((seq, d_model), dtype=jnp.float32)
    pe = pe.at[:, 0::2].set(jnp.sin(pos * den))
    pe = pe.at[:, 1::2].set(jnp.cos(pos * den))
    return pe[:, None, :]


if __name__ == "__main__":
    # Primary case: d_model=32 packs 4 positions per 128-lane flat row.
    d_model = 32
    batch, seq = 2, 8
    key = jax.random.PRNGKey(0)
    x = jax.random.normal(key, (batch, seq, d_model), dtype=jnp.float32)

    out = jax.block_until_ready(position_embedding_forward(x, d_model=d_model, max_len=5000))
    ref = _reference(seq, d_model)
    assert out.shape == (seq, 1, d_model), out.shape
    assert out.dtype == jnp.float32
    assert jnp.allclose(out, ref, atol=1e-5, rtol=1e-5), "mismatch vs reference (seed path)"

    # Long sequence: reuses the cached table (no second pallas_call) and exercises the
    # rotation recurrence, multiple re-seeds and both grid tiles.  Tolerance reflects
    # the ~2e-4 f32 quantization of pos*freq at angles of a few thousand radians.
    seq_long = 3200
    x_long = jax.random.normal(key, (batch, seq_long, d_model), dtype=jnp.float32)
    out_long = jax.block_until_ready(position_embedding_forward(x_long, d_model=d_model, max_len=5000))
    assert out_long.shape == (seq_long, 1, d_model)
    assert jnp.allclose(out_long, _reference(seq_long, d_model), atol=5e-4, rtol=0.0), \
        "mismatch (recurrence / multi-tile path)"

    # d_model that neither divides nor is divided by 128 -> lcm(48,128)=384 lane-dense path.
    d2, s2 = 48, 16
    x2 = jax.random.normal(jax.random.PRNGKey(0), (1, s2, d2), dtype=jnp.float32)
    out2 = jax.block_until_ready(position_embedding_forward(x2, d_model=d2, max_len=5000))
    assert out2.shape == (s2, 1, d2)
    assert jnp.allclose(out2, _reference(s2, d2), atol=1e-5, rtol=1e-5), "mismatch (lcm layout)"

    print("KERNEL_OK")
</pallas_src>

<mosaic_0001>
module attributes {stable_mosaic.version = 11 : i64} {
  func.func @_pos_embedding_kernel(%arg0: i32, %arg1: memref<8x128xf32, #tpu.memory_space<vmem>>, %arg2: memref<768x128xf32, #tpu.memory_space<vmem>>) attributes {dimension_semantics = [#tpu.dimension_semantics<parallel>], iteration_bounds = array<i64: 2>, scalar_prefetch = 0 : i64, scratch_operands = 0 : i64, tpu.core_type = #tpu.core_type<tc>, window_params = [{pipeline_mode = #tpu.pipeline_mode<synchronous>, transform_indices = @transform_0, window_bounds = array<i64: 8, 128>}, {transform_indices = @transform_1, window_bounds = array<i64: 768, 128>}]} {
    %c0 = arith.constant 0 : index
    %c0_0 = arith.constant 0 : index
    %0 = vector.load %arg1[%c0, %c0_0] : memref<8x128xf32, #tpu.memory_space<vmem>>, vector<8x128xf32>
    %1 = vector.extract_strided_slice %0 {offsets = [0, 0], sizes = [1, 128], strides = [1, 1]} : vector<8x128xf32> to vector<1x128xf32>
    %2 = vector.extract_strided_slice %0 {offsets = [1, 0], sizes = [1, 128], strides = [1, 1]} : vector<8x128xf32> to vector<1x128xf32>
    %3 = vector.extract_strided_slice %0 {offsets = [2, 0], sizes = [1, 128], strides = [1, 1]} : vector<8x128xf32> to vector<1x128xf32>
    %4 = vector.extract_strided_slice %0 {offsets = [3, 0], sizes = [1, 128], strides = [1, 1]} : vector<8x128xf32> to vector<1x128xf32>
    %5 = vector.extract_strided_slice %0 {offsets = [4, 0], sizes = [1, 128], strides = [1, 1]} : vector<8x128xf32> to vector<1x128xf32>
    %6 = tpu.iota {dimensions = array<i32: 0>} : vector<32x128xi32>
    %c768_i32 = arith.constant 768 : i32
    %7 = arith.muli %arg0, %c768_i32 : i32
    %c0_i32 = arith.constant 0 : i32
    %c3_i32 = arith.constant 3 : i32
    %8 = arith.addi %c0_i32, %c3_i32 : i32
    %c1_i32 = arith.constant 1 : i32
    scf.for %arg3 = %c0_i32 to %8 step %c1_i32  : i32 {
      %c1_i32_2 = arith.constant 1 : i32
      %9 = arith.muli %arg3, %c1_i32_2 : i32
      %c0_i32_3 = arith.constant 0 : i32
      %10 = arith.addi %c0_i32_3, %9 : i32
      %c256_i32 = arith.constant 256 : i32
      %11 = arith.muli %10, %c256_i32 : i32
      %12 = arith.addi %7, %11 : i32
      %13 = vector.broadcast %12 : i32 to vector<32x128xi32>
      %14 = arith.addi %13, %6 : vector<32x128xi32>
      %c4_i32 = arith.constant 4 : i32
      %15 = vector.broadcast %c4_i32 : i32 to vector<32x128xi32>
      %16 = arith.muli %14, %15 : vector<32x128xi32>
      %17 = arith.sitofp %16 : vector<32x128xi32> to vector<32x128xf32>
      %18 = vector.broadcast %3 : vector<1x128xf32> to vector<32x128xf32>
      %19 = arith.addf %17, %18 : vector<32x128xf32>
      %20 = vector.broadcast %1 : vector<1x128xf32> to vector<32x128xf32>
      %21 = arith.mulf %19, %20 : vector<32x128xf32>
      %22 = vector.broadcast %2 : vector<1x128xf32> to vector<32x128xf32>
      %23 = arith.addf %21, %22 : vector<32x128xf32>
      %24 = math.sin %23 : vector<32x128xf32>
      %25 = math.cos %23 : vector<32x128xf32>
      %c0_i32_4 = arith.constant 0 : i32
      %26 = arith.addi %11, %c0_i32_4 : i32
      %27 = tpu.assume_multiple %26, 32 : i32
      %28 = arith.index_cast %27 : i32 to index
      %c0_5 = arith.constant 0 : index
      %29 = vector.load %arg2[%28, %c0_5] : memref<768x128xf32, #tpu.memory_space<vmem>>, vector<32x128xf32>
      tpu.vector_store %arg2[%28, %c0_5], %24 {strides = array<i32>} : memref<768x128xf32, #tpu.memory_space<vmem>>, vector<32x128xf32>,
      %30 = vector.broadcast %4 : vector<1x128xf32> to vector<32x128xf32>
      %31 = arith.mulf %24, %30 : vector<32x128xf32>
      %32 = vector.broadcast %5 : vector<1x128xf32> to vector<32x128xf32>
      %33 = arith.mulf %25, %32 : vector<32x128xf32>
      %34 = arith.addf %31, %33 : vector<32x128xf32>
      %35 = vector.broadcast %4 : vector<1x128xf32> to vector<32x128xf32>
      %36 = arith.mulf %25, %35 : vector<32x128xf32>
      %37 = vector.broadcast %5 : vector<1x128xf32> to vector<32x128xf32>
      %38 = arith.mulf %24, %37 : vector<32x128xf32>
      %39 = arith.subf %36, %38 : vector<32x128xf32>
      %c32_i32 = arith.constant 32 : i32
      %40 = arith.addi %11, %c32_i32 : i32
      %41 = tpu.assume_multiple %40, 32 : i32
      %42 = arith.index_cast %41 : i32 to index
      %c0_6 = arith.constant 0 : index
      %43 = vector.load %arg2[%42, %c0_6] : memref<768x128xf32, #tpu.memory_space<vmem>>, vector<32x128xf32>
      tpu.vector_store %arg2[%42, %c0_6], %34 {strides = array<i32>} : memref<768x128xf32, #tpu.memory_space<vmem>>, vector<32x128xf32>,
      %44 = vector.broadcast %4 : vector<1x128xf32> to vector<32x128xf32>
      %45 = arith.mulf %34, %44 : vector<32x128xf32>
      %46 = vector.broadcast %5 : vector<1x128xf32> to vector<32x128xf32>
      %47 = arith.mulf %39, %46 : vector<32x128xf32>
      %48 = arith.addf %45, %47 : vector<32x128xf32>
      %49 = vector.broadcast %4 : vector<1x128xf32> to vector<32x128xf32>
      %50 = arith.mulf %39, %49 : vector<32x128xf32>
      %51 = vector.broadcast %5 : vector<1x128xf32> to vector<32x128xf32>
      %52 = arith.mulf %34, %51 : vector<32x128xf32>
      %53 = arith.subf %50, %52 : vector<32x128xf32>
      %c64_i32 = arith.constant 64 : i32
      %54 = arith.addi %11, %c64_i32 : i32
      %55 = tpu.assume_multiple %54, 32 : i32
      %56 = arith.index_cast %55 : i32 to index
      %c0_7 = arith.constant 0 : index
      %57 = vector.load %arg2[%56, %c0_7] : memref<768x128xf32, #tpu.memory_space<vmem>>, vector<32x128xf32>
      tpu.vector_store %arg2[%56, %c0_7], %48 {strides = array<i32>} : memref<768x128xf32, #tpu.memory_space<vmem>>, vector<32x128xf32>,
      %58 = vector.broadcast %4 : vector<1x128xf32> to vector<32x128xf32>
      %59 = arith.mulf %48, %58 : vector<32x128xf32>
      %60 = vector.broadcast %5 : vector<1x128xf32> to vector<32x128xf32>
      %61 = arith.mulf %53, %60 : vector<32x128xf32>
      %62 = arith.addf %59, %61 : vector<32x128xf32>
      %63 = vector.broadcast %4 : vector<1x128xf32> to vector<32x128xf32>
      %64 = arith.mulf %53, %63 : vector<32x128xf32>
      %65 = vector.broadcast %5 : vector<1x128xf32> to vector<32x128xf32>
      %66 = arith.mulf %48, %65 : vector<32x128xf32>
      %67 = arith.subf %64, %66 : vector<32x128xf32>
      %c96_i32 = arith.constant 96 : i32
      %68 = arith.addi %11, %c96_i32 : i32
      %69 = tpu.assume_multiple %68, 32 : i32
      %70 = arith.index_cast %69 : i32 to index
      %c0_8 = arith.constant 0 : index
      %71 = vector.load %arg2[%70, %c0_8] : memref<768x128xf32, #tpu.memory_space<vmem>>, vector<32x128xf32>
      tpu.vector_store %arg2[%70, %c0_8], %62 {strides = array<i32>} : memref<768x128xf32, #tpu.memory_space<vmem>>, vector<32x128xf32>,
      %72 = vector.broadcast %4 : vector<1x128xf32> to vector<32x128xf32>
      %73 = arith.mulf %62, %72 : vector<32x128xf32>
      %74 = vector.broadcast %5 : vector<1x128xf32> to vector<32x128xf32>
      %75 = arith.mulf %67, %74 : vector<32x128xf32>
      %76 = arith.addf %73, %75 : vector<32x128xf32>
      %77 = vector.broadcast %4 : vector<1x128xf32> to vector<32x128xf32>
      %78 = arith.mulf %67, %77 : vector<32x128xf32>
      %79 = vector.broadcast %5 : vector<1x128xf32> to vector<32x128xf32>
      %80 = arith.mulf %62, %79 : vector<32x128xf32>
      %81 = arith.subf %78, %80 : vector<32x128xf32>
      %c128_i32 = arith.constant 128 : i32
      %82 = arith.addi %11, %c128_i32 : i32
      %83 = tpu.assume_multiple %82, 32 : i32
      %84 = arith.index_cast %83 : i32 to index
      %c0_9 = arith.constant 0 : index
      %85 = vector.load %arg2[%84, %c0_9] : memref<768x128xf32, #tpu.memory_space<vmem>>, vector<32x128xf32>
      tpu.vector_store %arg2[%84, %c0_9], %76 {strides = array<i32>} : memref<768x128xf32, #tpu.memory_space<vmem>>, vector<32x128xf32>,
      %86 = vector.broadcast %4 : vector<1x128xf32> to vector<32x128xf32>
      %87 = arith.mulf %76, %86 : vector<32x128xf32>
      %88 = vector.broadcast %5 : vector<1x128xf32> to vector<32x128xf32>
      %89 = arith.mulf %81, %88 : vector<32x128xf32>
      %90 = arith.addf %87, %89 : vector<32x128xf32>
      %91 = vector.broadcast %4 : vector<1x128xf32> to vector<32x128xf32>
      %92 = arith.mulf %81, %91 : vector<32x128xf32>
      %93 = vector.broadcast %5 : vector<1x128xf32> to vector<32x128xf32>
      %94 = arith.mulf %76, %93 : vector<32x128xf32>
      %95 = arith.subf %92, %94 : vector<32x128xf32>
      %c160_i32 = arith.constant 160 : i32
      %96 = arith.addi %11, %c160_i32 : i32
      %97 = tpu.assume_multiple %96, 32 : i32
      %98 = arith.index_cast %97 : i32 to index
      %c0_10 = arith.constant 0 : index
      %99 = vector.load %arg2[%98, %c0_10] : memref<768x128xf32, #tpu.memory_space<vmem>>, vector<32x128xf32>
      tpu.vector_store %arg2[%98, %c0_10], %90 {strides = array<i32>} : memref<768x128xf32, #tpu.memory_space<vmem>>, vector<32x128xf32>,
      %100 = vector.broadcast %4 : vector<1x128xf32> to vector<32x128xf32>
      %101 = arith.mulf %90, %100 : vector<32x128xf32>
      %102 = vector.broadcast %5 : vector<1x128xf32> to vector<32x128xf32>
      %103 = arith.mulf %95, %102 : vector<32x128xf32>
      %104 = arith.addf %101, %103 : vector<32x128xf32>
      %105 = vector.broadcast %4 : vector<1x128xf32> to vector<32x128xf32>
      %106 = arith.mulf %95, %105 : vector<32x128xf32>
      %107 = vector.broadcast %5 : vector<1x128xf32> to vector<32x128xf32>
      %108 = arith.mulf %90, %107 : vector<32x128xf32>
      %109 = arith.subf %106, %108 : vector<32x128xf32>
      %c192_i32 = arith.constant 192 : i32
      %110 = arith.addi %11, %c192_i32 : i32
      %111 = tpu.assume_multiple %110, 32 : i32
      %112 = arith.index_cast %111 : i32 to index
      %c0_11 = arith.constant 0 : index
      %113 = vector.load %arg2[%112, %c0_11] : memref<768x128xf32, #tpu.memory_space<vmem>>, vector<32x128xf32>
      tpu.vector_store %arg2[%112, %c0_11], %104 {strides = array<i32>} : memref<768x128xf32, #tpu.memory_space<vmem>>, vector<32x128xf32>,
      %114 = vector.broadcast %4 : vector<1x128xf32> to vector<32x128xf32>
      %115 = arith.mulf %104, %114 : vector<32x128xf32>
      %116 = vector.broadcast %5 : vector<1x128xf32> to vector<32x128xf32>
      %117 = arith.mulf %109, %116 : vector<32x128xf32>
      %118 = arith.addf %115, %117 : vector<32x128xf32>
      %c224_i32 = arith.constant 224 : i32
      %119 = arith.addi %11, %c224_i32 : i32
      %120 = tpu.assume_multiple %119, 32 : i32
      %121 = arith.index_cast %120 : i32 to index
      %c0_12 = arith.constant 0 : index
      %122 = vector.load %arg2[%121, %c0_12] : memref<768x128xf32, #tpu.memory_space<vmem>>, vector<32x128xf32>
      tpu.vector_store %arg2[%121, %c0_12], %118 {strides = array<i32>} : memref<768x128xf32, #tpu.memory_space<vmem>>, vector<32x128xf32>,
    }
    %c3_i32_1 = arith.constant 3 : i32
    return
  }
  func.func @transform_0(%arg0: i32) -> (i32, i32) {
    %c0_i32 = arith.constant 0 : i32
    %c0_i32_0 = arith.constant 0 : i32
    %c0_i32_1 = arith.constant 0 : i32
    return %c0_i32, %c0_i32_0 : i32, i32
  }
  func.func @transform_1(%arg0: i32) -> (i32, i32) {
    %c0_i32 = arith.constant 0 : i32
    %c0_i32_0 = arith.constant 0 : i32
    return %arg0, %c0_i32 : i32, i32
  }
}

</mosaic_0001>

<llo_original>
// kernel: tpu_custom_call.1
$region0: #{tpu_custom_call.1}
  #allocation0 [shape = 'u32[]', space=smem, size = 0x4, offset = 0x4, fixed_abs, tag = 'smem constant byte address 0x4 - core index']
  #allocation1 [shape = 'u32[144,128]{1,0:T(1,128)}', space=vmem, size = 0x12000, scoped, tag = 'internal scratch']
  %s0 = inlined_call_operand.hbm [shape: f32[8,128], index: 0, kind: input, shape index: {}]
  %s1 = inlined_call_operand.hbm [shape: f32[1536,128], index: 1, kind: output, shape index: {}]
  %s2 = sld [smem:[#allocation0]]
  $region48: #{tpu_custom_call.1} parent=0
    _
  %s4 = ssub.s32 1, %s2
  %s5 = scalar_select 0, %s4, %s2
  $region1: #{tpu_custom_call.1} parent=0
    #allocation2 [shape = 'u8[4096]{0}', space=vmem, size = 0x1000, scoped, tag = 'input window, operand 0, single buffered']
    #allocation3 [shape = 's32[2]{0}', space=sflag, size = 0x8, scoped, tag = 'scoped memory for tpu_custom_call.1']
    #allocation4 [shape = 's32[2]{0}', space=sflag, size = 0x8, scoped, tag = 'scoped memory for tpu_custom_call.1']
    #allocation5 [shape = 'u8[786432]{0}', space=vmem, size = 0xc0000, scoped, tag = 'output window, operand 0']
    %6 = vsyncpa [#allocation3], 0
    %7 = vsyncpa [#allocation4], 0
    %s8 = scalar_lea.sflag [#allocation4], 1
    %9 = vsyncpa %s8, 0
    loop: start=0, step=1, limit=4
    $region2: #{tpu_custom_call.1} parent=1 // loop_pre_header
      _
    $region3: #{tpu_custom_call.1} parent=1 // loop_header
      %s11 = sphi 0, %s15
      %p12 = scmp.ge.s32.totalorder %s11, 4
      %s19 = sphi 0, %s19
      %s21 = sphi 0, %s19
      %s22 = sphi 0, %s21
      %s36 = sphi 0, %s22
      %s42 = sphi 0, %s44
      %s45 = sphi 0, %s42
      %s46 = sphi 0, %s45
      %s62 = sphi 0, %s46
    $region4: #{tpu_custom_call.1} parent=1 // loop_header_branch
      %14 = sbr.rel (%p12) target = $region8
    $region5: #{tpu_custom_call.1} parent=1 // loop_body
      %s16 = ssub.s32 %s11, 1
      %s17 = ssub.s32 %s11, 2
      %s18 = sadd.s32 %s11, 1
      %s20 = sadd.s32 %s19, 1
      %p23 = scmp.eq.s32.totalorder %s11, 1
      %p24 = scmp.ne.s32.totalorder %s19, %s21
      %p25 = scmp.eq.s32.totalorder %s11, 0
      %p26 = por %p24, %p25
      %p27 = scmp.ne.s32.totalorder %s19, %s21
      %p28 = scmp.eq.s32.totalorder %s16, 1
      %p29 = por %p27, %p28
      %p30 = scmp.ne.s32.totalorder %s21, %s22
      %p31 = scmp.eq.s32.totalorder %s16, 0
      %p32 = por %p30, %p31
      %p33 = scmp.ne.s32.totalorder %s21, %s22
      %p34 = scmp.eq.s32.totalorder %s17, 1
      %p35 = por %p33, %p34
      %p37 = scmp.ne.s32.totalorder %s22, %s36
      %p38 = scmp.eq.s32.totalorder %s17, 0
      %p39 = por %p37, %p38
      %s40 = ssub.s32 %s11, %s18
      %p41 = scmp.eq.s32.totalorder %s40, 0
      %s43 = sadd.s32 %s42, 1
      %s44 = scalar_select %p41, %s42, %s43
      %p47 = pneg %p41
      %p48 = scmp.eq.s32.totalorder %s11, 1
      %p49 = por %p47, %p48
      %p50 = scmp.ne.s32.totalorder %s42, %s45
      %p51 = scmp.eq.s32.totalorder %s11, 0
      %p52 = por %p50, %p51
      %p53 = scmp.ne.s32.totalorder %s42, %s45
      %p54 = scmp.eq.s32.totalorder %s16, 1
      %p55 = por %p53, %p54
      %p56 = scmp.ne.s32.totalorder %s45, %s46
      %p57 = scmp.eq.s32.totalorder %s16, 0
      %p58 = por %p56, %p57
      %p59 = scmp.ne.s32.totalorder %s45, %s46
      %p60 = scmp.eq.s32.totalorder %s17, 1
      %p61 = por %p59, %p60
      %p63 = scmp.ne.s32.totalorder %s46, %s62
      %p64 = scmp.eq.s32.totalorder %s17, 0
      %p65 = por %p63, %p64
      %p66 = scmp.le.s32.totalorder 1, %s11
      %p67 = scmp.lt.s32.totalorder %s11, 3
      %p68 = pnand %p66, %p67
      %p69 = pneg %p68
      // Predicated region
      $region9: #{tpu_custom_call.1} parent=5 // pred_check
        _
      $region10: #{tpu_custom_call.1} parent=5 // pred_check_branch
        %71 = sbr.rel (%p68) target = $region12
      $region11: #{tpu_custom_call.1} parent=5 // pred_region
        %s72 = ssub.s32 %s11, 1
        // Predicated region
        $region13: #{tpu_custom_call.1} parent=11 // pred_check
          %p73 = pneg %p32
        $region14: #{tpu_custom_call.1} parent=11 // pred_check_branch
          %75 = sbr.rel (%p73) target = $region16
        $region15: #{tpu_custom_call.1} parent=11 // pred_region
          %s77 = ssub.s32 128, 128
          %78 = vsyncadd [#allocation3], %s77
          %s80 = sshll.u32 [#allocation2], 4
          %s81 = int_to_ptr.vmem [resolvable:$true] %s80
          %83 = dma.hbm_to_vmem [thread:$0]  %s0, 128, %s81, [#allocation3]
        $region16: #{tpu_custom_call.1} parent=11 // pred_fallthru
          _
      $region12: #{tpu_custom_call.1} parent=5 // pred_fallthru
        _
      %p84 = scmp.lt.s32.totalorder %s11, 2
      // Predicated region
      $region17: #{tpu_custom_call.1} parent=5 // pred_check
        %p85 = pneg %p84
      $region18: #{tpu_custom_call.1} parent=5 // pred_check_branch
        %87 = sbr.rel (%p85) target = $region20
      $region19: #{tpu_custom_call.1} parent=5 // pred_region
        _
      $region20: #{tpu_custom_call.1} parent=5 // pred_fallthru
        _
      %p88 = scmp.le.s32.totalorder 1, %s11
      %p89 = scmp.lt.s32.totalorder %s11, 3
      %p90 = pnand %p88, %p89
      %p91 = pneg %p90
      // Predicated region
      $region21: #{tpu_custom_call.1} parent=5 // pred_check
        _
      $region22: #{tpu_custom_call.1} parent=5 // pred_check_branch
        %93 = sbr.rel (%p90) target = $region24
      $region23: #{tpu_custom_call.1} parent=5 // pred_region
        %s94 = ssub.s32 %s11, 1
        // Predicated region
        $region25: #{tpu_custom_call.1} parent=23 // pred_check
          %p95 = pneg %p32
        $region26: #{tpu_custom_call.1} parent=23 // pred_check_branch
          %97 = sbr.rel (%p95) target = $region28
        $region27: #{tpu_custom_call.1} parent=23 // pred_region
          %98 = dma.done [#allocation3], 128
        $region28: #{tpu_custom_call.1} parent=23 // pred_fallthru
          _
        %p99 = pneg %p32
        %p100 = pneg %p29
        %p101 = pneg %p58
        %p102 = pneg %p55
        %s103 = sand.u32 %s45, 1
        %s104 = scalar_lea.sflag [#allocation4], %s103
        %s105 = sand.u32 %s45, 1
        %s106 = smul.addr %s105, 768
        %s107 = scalar_lea.vmem [#allocation5], %s106
        %s108 = smul.u32 96, %s16
        %v109 = vld [vmem:[#allocation2] sm:$0xff]
        %v110 = vlaneseq
        %v111 = vshrl.u32 %v110, 7
        %v112 = vadd.s32 %v111, 8
        %v113 = vadd.s32 %v111, 16
        %v114 = vadd.s32 %v111, 24
        %s115 = smul.u32 %s16, 768
        loop: start=0, step=1, limit=3
        $region29: #{tpu_custom_call.1} parent=23 // loop_pre_header
          _
        $region30: #{tpu_custom_call.1} parent=23 // loop_header
          %s117 = sphi 0, %s121
          %p118 = scmp.ge.s32.totalorder %s117, 3
        $region31: #{tpu_custom_call.1} parent=23 // loop_header_branch
          %120 = sbr.rel (%p118) target = $region35
        $region32: #{tpu_custom_call.1} parent=23 // loop_body
          %s122 = smul.u32 %s117, 256
          %s123 = sadd.s32 %s115, %s122
          %v124 = vstv %s123
          %v125 = vadd.s32 %v124, %v111
          %v126 = vadd.s32 %v124, %v112
          %v127 = vadd.s32 %v124, %v113
          %v128 = vadd.s32 %v124, %v114
          %v129 = vmul.u32 %v125, 4
          %v130 = vmul.u32 %v126, 4
          %v131 = vmul.u32 %v127, 4
          %v132 = vmul.u32 %v128, 4
          %v133 = vcvt.s32.f32 %v129
          %v134 = vcvt.s32.f32 %v130
          %v135 = vcvt.s32.f32 %v131
          %v136 = vcvt.s32.f32 %v132
          %v137 = vlaneseq
          %v138 = vshrl.u32 %v137, 7
          %v139 = vsub.s32 2, %v138
          %v140 = vrot.slane %v109, %v139
          %v141 = vadd.f32 %v133, %v140
          %v142 = vadd.f32 %v134, %v140
          %v143 = vadd.f32 %v135, %v140
          %v144 = vadd.f32 %v136, %v140
          %v145 = vlaneseq
          %v146 = vshrl.u32 %v145, 7
          %v147 = vsub.s32 0, %v146
          %v148 = vrot.slane %v109, %v147
          %v149 = vmul.f32 %v141, %v148
          %v150 = vmul.f32 %v142, %v148
          %v151 = vmul.f32 %v143, %v148
          %v152 = vmul.f32 %v144, %v148
          %v153 = vlaneseq
          %v154 = vshrl.u32 %v153, 7
          %v155 = vsub.s32 1, %v154
          %v156 = vrot.slane %v109, %v155
          %v157 = vadd.f32 %v149, %v156
          %v158 = vadd.f32 %v150, %v156
          %v159 = vadd.f32 %v151, %v156
          %v160 = vadd.f32 %v152, %v156
          %v161 = vand.u32 2147483647, %v157
          %vm162 = vcmp.le.f32.partialorder %v161, 0.7853982
          %vm163 = vcmp.lt.s32.totalorder %v157, 0
          %v164 = vand.u32 %v157, 2139095040
          %v165 = vshrl.u32 %v164, 23
          %v166 = vsub.s32 %v165, 127
          %v167 = vand.u32 2147483647, %v157
          %v168 = vand.u32 %v167, 8388607
          %v169 = vor.u32 %v168, 8388608
          %v170 = vsub.s32 0, %v169
          %v171 = vadd.s32 %v166, 1
          %vm172 = vcmp.gt.s32.totalorder %v171, 0
          %v173 = vsel %vm172, %v171, 0
          %v174 = vshrl.u32 %v173, 5
          %v175 = vand.u32 %v173, 31
          %v176 = vsub.s32 32, %v175
          %v177 = vshrl.u32 683565275, %v176
          %v178 = vshll.u32 683565275, %v175
          %v179 = vshrl.u32 2475754826, %v176
          %v180 = vor.u32 %v178, %v179
          %v181 = vshll.u32 2475754826, %v175
          %v182 = vshrl.u32 2131351028, %v176
          %v183 = vor.u32 %v181, %v182
          %v184 = vshll.u32 2131351028, %v175
          %v185 = vshrl.u32 2102212464, %v176
          %v186 = vor.u32 %v184, %v185
          %v187 = vshll.u32 2102212464, %v175
          %v188 = vshrl.u32 920167782, %v176
          %v189 = vor.u32 %v187, %v188
          %v190 = vshll.u32 920167782, %v175
          %v191 = vshrl.u32 1326507024, %v176
          %v192 = vor.u32 %v190, %v191
          %vm193 = vcmp.lt.s32.totalorder %v174, 1
          %vm194 = vcmp.lt.s32.totalorder %v174, 2
          %vm195 = vcmp.lt.s32.totalorder %v174, 3
          %vm196 = vcmp.lt.s32.totalorder %v174, 4
          %v197 = vsel %vm193, %v177, %v180
          %v198 = vsel %vm196, %v186, 2102212464
          %v199 = vsel %vm195, %v183, %v198
          %v200 = vsel %vm194, %v197, %v199
          %v201 = vsel %vm193, %v180, %v183
          %v202 = vsel %vm196, %v189, 920167782
          %v203 = vsel %vm195, %v186, %v202
          %v204 = vsel %vm194, %v201, %v203
          %v205 = vsel %vm193, %v183, %v186
          %v206 = vsel %vm196, %v192, 1326507024
          %v207 = vsel %vm195, %v189, %v206
          %v208 = vsel %vm194, %v205, %v207
          %v209 = vshll.u32 %v169, 8
          %v210 = vmul.u32.u64.compose %v209, %v208
          %v211 = vextract.low.u32 %v210
          %v212 = vextract.high.u32 %v210
          %v213 = vmul.u32.u64.compose %v209, %v204
          %v214 = vextract.low.u32 %v213
          %v215 = vextract.high.u32 %v213
          %v216 = vmul.u32 %v209, %v200
          %v217 = vadd.s32 %v212, %v214
          %vm218 = vc.u32 %v212, %v214
          %v219 = vadd.s32 %v215, 1
          %v220 = vsel %vm218, %v219, %v215
          %v221 = vadd.s32 %v216, %v220
          %v222 = vadd.s32 %v221, 536870912
          %v223 = vshrl.u32 %v222, 30
          %v224 = vshll.u32 %v223, 30
          %v225 = vsub.s32 %v221, %v224
          %vm226 = vcmp.lt.s32.totalorder %v225, 0
          %v227 = vsub.s32 0, %v225
          %v228 = vsel %vm226, %v227, %v225
          %v229 = vclz %v228
          %v230 = vsub.s32 %v229, 2
          %vm231 = vcmp.gt.s32.totalorder 0, %v230
          %v232 = vsel %vm231, 0, %v230
          %v233 = vsub.s32 32, %v232
          %v234 = vshll.u32 %v225, %v232
          %v235 = vshrl.u32 %v217, %v233
          %v236 = vor.u32 %v234, %v235
          %v237 = vsub.s32 4294967266, %v232
          %v238 = vadd.s32 %v237, 127
          %v239 = vshll.u32 %v238, 23
          %v240 = vor.u32 4788187, %v239
          %v241 = vand.u32 2147483647, %v240
          %v243 = vcvt.s32.f32 %v236
          %v244 = vmul.f32 %v243, %v241
          %v245 = vxor.u32 %v244, 2147483648
          %v246 = vsel %vm163, %v245, %v244
          %v247 = vsub.s32 4, %v223
          %v248 = vsel %vm163, %v247, %v223
          %v249 = vsel %vm162, %v157, %v246
          %v250 = vsel %vm162, 0, %v248
          %v251 = vcosq.f32.pop %v249
          %v252 = vsinq.f32.pop %v249
          %vm253 = vweird.f32 %v157
          %v254 = vadd.s32 %v250, 3
          %v255 = vand.u32 %v254, 3
          %vm256 = vcmp.lt.s32.totalorder %v255, 2
          %vm257 = vcmp.eq.s32.totalorder %v255, 0
          %v258 = vxor.u32 %v252, 2147483648
          %v259 = vsel %vm257, %v251, %v258
          %vm260 = vcmp.eq.s32.totalorder %v255, 2
          %v261 = vxor.u32 %v251, 2147483648
          %v262 = vsel %vm260, %v261, %v252
          %v263 = vsel %vm256, %v259, %v262
          %v264 = vsel %vm253, nan, %v263
          %v265 = vand.u32 2147483647, %v158
          %vm266 = vcmp.le.f32.partialorder %v265, 0.7853982
          %vm267 = vcmp.lt.s32.totalorder %v158, 0
          %v268 = vand.u32 %v158, 2139095040
          %v269 = vshrl.u32 %v268, 23
          %v270 = vsub.s32 %v269, 127
          %v271 = vand.u32 2147483647, %v158
          %v272 = vand.u32 %v271, 8388607
          %v273 = vor.u32 %v272, 8388608
          %v274 = vsub.s32 0, %v273
          %v275 = vadd.s32 %v270, 1
          %vm276 = vcmp.gt.s32.totalorder %v275, 0
          %v277 = vsel %vm276, %v275, 0
          %v278 = vshrl.u32 %v277, 5
          %v279 = vand.u32 %v277, 31
          %v280 = vsub.s32 32, %v279
          %v281 = vshrl.u32 683565275, %v280
          %v282 = vshll.u32 683565275, %v279
          %v283 = vshrl.u32 2475754826, %v280
          %v284 = vor.u32 %v282, %v283
          %v285 = vshll.u32 2475754826, %v279
          %v286 = vshrl.u32 2131351028, %v280
          %v287 = vor.u32 %v285, %v286
          %v288 = vshll.u32 2131351028, %v279
          %v289 = vshrl.u32 2102212464, %v280
          %v290 = vor.u32 %v288, %v289
          %v291 = vshll.u32 2102212464, %v279
          %v292 = vshrl.u32 920167782, %v280
          %v293 = vor.u32 %v291, %v292
          %v294 = vshll.u32 920167782, %v279
          %v295 = vshrl.u32 1326507024, %v280
          %v296 = vor.u32 %v294, %v295
          %vm297 = vcmp.lt.s32.totalorder %v278, 1
          %vm298 = vcmp.lt.s32.totalorder %v278, 2
          %vm299 = vcmp.lt.s32.totalorder %v278, 3
          %vm300 = vcmp.lt.s32.totalorder %v278, 4
          %v301 = vsel %vm297, %v281, %v284
          %v302 = vsel %vm300, %v290, 2102212464
          %v303 = vsel %vm299, %v287, %v302
          %v304 = vsel %vm298, %v301, %v303
          %v305 = vsel %vm297, %v284, %v287
          %v306 = vsel %vm300, %v293, 920167782
          %v307 = vsel %vm299, %v290, %v306
          %v308 = vsel %vm298, %v305, %v307
          %v309 = vsel %vm297, %v287, %v290
          %v310 = vsel %vm300, %v296, 1326507024
          %v311 = vsel %vm299, %v293, %v310
          %v312 = vsel %vm298, %v309, %v311
          %v313 = vshll.u32 %v273, 8
          %v314 = vmul.u32.u64.compose %v313, %v312
          %v315 = vextract.low.u32 %v314
          %v316 = vextract.high.u32 %v314
          %v317 = vmul.u32.u64.compose %v313, %v308
          %v318 = vextract.low.u32 %v317
          %v319 = vextract.high.u32 %v317
          %v320 = vmul.u32 %v313, %v304
          %v321 = vadd.s32 %v316, %v318
          %vm322 = vc.u32 %v316, %v318
          %v323 = vadd.s32 %v319, 1
          %v324 = vsel %vm322, %v323, %v319
          %v325 = vadd.s32 %v320, %v324
          %v326 = vadd.s32 %v325, 536870912
          %v327 = vshrl.u32 %v326, 30
          %v328 = vshll.u32 %v327, 30
          %v329 = vsub.s32 %v325, %v328
          %vm330 = vcmp.lt.s32.totalorder %v329, 0
          %v331 = vsub.s32 0, %v329
          %v332 = vsel %vm330, %v331, %v329
          %v333 = vclz %v332
          %v334 = vsub.s32 %v333, 2
          %vm335 = vcmp.gt.s32.totalorder 0, %v334
          %v336 = vsel %vm335, 0, %v334
          %v337 = vsub.s32 32, %v336
          %v338 = vshll.u32 %v329, %v336
          %v339 = vshrl.u32 %v321, %v337
          %v340 = vor.u32 %v338, %v339
          %v341 = vsub.s32 4294967266, %v336
          %v342 = vadd.s32 %v341, 127
          %v343 = vshll.u32 %v342, 23
          %v344 = vor.u32 4788187, %v343
          %v345 = vand.u32 2147483647, %v344
          %v347 = vcvt.s32.f32 %v340
          %v348 = vmul.f32 %v347, %v345
          %v349 = vxor.u32 %v348, 2147483648
          %v350 = vsel %vm267, %v349, %v348
          %v351 = vsub.s32 4, %v327
          %v352 = vsel %vm267, %v351, %v327
          %v353 = vsel %vm266, %v158, %v350
          %v354 = vsel %vm266, 0, %v352
          %v355 = vcosq.f32.pop %v353
          %v356 = vsinq.f32.pop %v353
          %vm357 = vweird.f32 %v158
          %v358 = vadd.s32 %v354, 3
          %v359 = vand.u32 %v358, 3
          %vm360 = vcmp.lt.s32.totalorder %v359, 2
          %vm361 = vcmp.eq.s32.totalorder %v359, 0
          %v362 = vxor.u32 %v356, 2147483648
          %v363 = vsel %vm361, %v355, %v362
          %vm364 = vcmp.eq.s32.totalorder %v359, 2
          %v365 = vxor.u32 %v355, 2147483648
          %v366 = vsel %vm364, %v365, %v356
          %v367 = vsel %vm360, %v363, %v366
          %v368 = vsel %vm357, nan, %v367
          %v369 = vand.u32 2147483647, %v159
          %vm370 = vcmp.le.f32.partialorder %v369, 0.7853982
          %vm371 = vcmp.lt.s32.totalorder %v159, 0
          %v372 = vand.u32 %v159, 2139095040
          %v373 = vshrl.u32 %v372, 23
          %v374 = vsub.s32 %v373, 127
          %v375 = vand.u32 2147483647, %v159
          %v376 = vand.u32 %v375, 8388607
          %v377 = vor.u32 %v376, 8388608
          %v378 = vsub.s32 0, %v377
          %v379 = vadd.s32 %v374, 1
          %vm380 = vcmp.gt.s32.totalorder %v379, 0
          %v381 = vsel %vm380, %v379, 0
          %v382 = vshrl.u32 %v381, 5
          %v383 = vand.u32 %v381, 31
          %v384 = vsub.s32 32, %v383
          %v385 = vshrl.u32 683565275, %v384
          %v386 = vshll.u32 683565275, %v383
          %v387 = vshrl.u32 2475754826, %v384
          %v388 = vor.u32 %v386, %v387
          %v389 = vshll.u32 2475754826, %v383
          %v390 = vshrl.u32 2131351028, %v384
          %v391 = vor.u32 %v389, %v390
          %v392 = vshll.u32 2131351028, %v383
          %v393 = vshrl.u32 2102212464, %v384
          %v394 = vor.u32 %v392, %v393
          %v395 = vshll.u32 2102212464, %v383
          %v396 = vshrl.u32 920167782, %v384
          %v397 = vor.u32 %v395, %v396
          %v398 = vshll.u32 920167782, %v383
          %v399 = vshrl.u32 1326507024, %v384
          %v400 = vor.u32 %v398, %v399
          %vm401 = vcmp.lt.s32.totalorder %v382, 1
          %vm402 = vcmp.lt.s32.totalorder %v382, 2
          %vm403 = vcmp.lt.s32.totalorder %v382, 3
          %vm404 = vcmp.lt.s32.totalorder %v382, 4
          %v405 = vsel %vm401, %v385, %v388
          %v406 = vsel %vm404, %v394, 2102212464
          %v407 = vsel %vm403, %v391, %v406
          %v408 = vsel %vm402, %v405, %v407
          %v409 = vsel %vm401, %v388, %v391
          %v410 = vsel %vm404, %v397, 920167782
          %v411 = vsel %vm403, %v394, %v410
          %v412 = vsel %vm402, %v409, %v411
          %v413 = vsel %vm401, %v391, %v394
          %v414 = vsel %vm404, %v400, 1326507024
          %v415 = vsel %vm403, %v397, %v414
          %v416 = vsel %vm402, %v413, %v415
          %v417 = vshll.u32 %v377, 8
          %v418 = vmul.u32.u64.compose %v417, %v416
          %v419 = vextract.low.u32 %v418
          %v420 = vextract.high.u32 %v418
          %v421 = vmul.u32.u64.compose %v417, %v412
          %v422 = vextract.low.u32 %v421
          %v423 = vextract.high.u32 %v421
          %v424 = vmul.u32 %v417, %v408
          %v425 = vadd.s32 %v420, %v422
          %vm426 = vc.u32 %v420, %v422
          %v427 = vadd.s32 %v423, 1
          %v428 = vsel %vm426, %v427, %v423
          %v429 = vadd.s32 %v424, %v428
          %v430 = vadd.s32 %v429, 536870912
          %v431 = vshrl.u32 %v430, 30
          %v432 = vshll.u32 %v431, 30
          %v433 = vsub.s32 %v429, %v432
          %vm434 = vcmp.lt.s32.totalorder %v433, 0
          %v435 = vsub.s32 0, %v433
          %v436 = vsel %vm434, %v435, %v433
          %v437 = vclz %v436
          %v438 = vsub.s32 %v437, 2
          %vm439 = vcmp.gt.s32.totalorder 0, %v438
          %v440 = vsel %vm439, 0, %v438
          %v441 = vsub.s32 32, %v440
          %v442 = vshll.u32 %v433, %v440
          %v443 = vshrl.u32 %v425, %v441
          %v444 = vor.u32 %v442, %v443
          %v445 = vsub.s32 4294967266, %v440
          %v446 = vadd.s32 %v445, 127
          %v447 = vshll.u32 %v446, 23
          %v448 = vor.u32 4788187, %v447
          %v449 = vand.u32 2147483647, %v448
          %v451 = vcvt.s32.f32 %v444
          %v452 = vmul.f32 %v451, %v449
          %v453 = vxor.u32 %v452, 2147483648
          %v454 = vsel %vm371, %v453, %v452
          %v455 = vsub.s32 4, %v431
          %v456 = vsel %vm371, %v455, %v431
          %v457 = vsel %vm370, %v159, %v454
          %v458 = vsel %vm370, 0, %v456
          %v459 = vcosq.f32.pop %v457
          %v460 = vsinq.f32.pop %v457
          %vm461 = vweird.f32 %v159
          %v462 = vadd.s32 %v458, 3
          %v463 = vand.u32 %v462, 3
          %vm464 = vcmp.lt.s32.totalorder %v463, 2
          %vm465 = vcmp.eq.s32.totalorder %v463, 0
          %v466 = vxor.u32 %v460, 2147483648
          %v467 = vsel %vm465, %v459, %v466
          %vm468 = vcmp.eq.s32.totalorder %v463, 2
          %v469 = vxor.u32 %v459, 2147483648
          %v470 = vsel %vm468, %v469, %v460
          %v471 = vsel %vm464, %v467, %v470
          %v472 = vsel %vm461, nan, %v471
          %v473 = vand.u32 2147483647, %v160
          %vm474 = vcmp.le.f32.partialorder %v473, 0.7853982
          %vm475 = vcmp.lt.s32.totalorder %v160, 0
          %v476 = vand.u32 %v160, 2139095040
          %v477 = vshrl.u32 %v476, 23
          %v478 = vsub.s32 %v477, 127
          %v479 = vand.u32 2147483647, %v160
          %v480 = vand.u32 %v479, 8388607
          %v481 = vor.u32 %v480, 8388608
          %v482 = vsub.s32 0, %v481
          %v483 = vadd.s32 %v478, 1
          %vm484 = vcmp.gt.s32.totalorder %v483, 0
          %v485 = vsel %vm484, %v483, 0
          %v486 = vshrl.u32 %v485, 5
          %v487 = vand.u32 %v485, 31
          %v488 = vsub.s32 32, %v487
          %v489 = vshrl.u32 683565275, %v488
          %v490 = vshll.u32 683565275, %v487
          %v491 = vshrl.u32 2475754826, %v488
          %v492 = vor.u32 %v490, %v491
          %v493 = vshll.u32 2475754826, %v487
          %v494 = vshrl.u32 2131351028, %v488
          %v495 = vor.u32 %v493, %v494
          %v496 = vshll.u32 2131351028, %v487
          %v497 = vshrl.u32 2102212464, %v488
          %v498 = vor.u32 %v496, %v497
          %v499 = vshll.u32 2102212464, %v487
          %v500 = vshrl.u32 920167782, %v488
          %v501 = vor.u32 %v499, %v500
          %v502 = vshll.u32 920167782, %v487
          %v503 = vshrl.u32 1326507024, %v488
          %v504 = vor.u32 %v502, %v503
          %vm505 = vcmp.lt.s32.totalorder %v486, 1
          %vm506 = vcmp.lt.s32.totalorder %v486, 2
          %vm507 = vcmp.lt.s32.totalorder %v486, 3
          %vm508 = vcmp.lt.s32.totalorder %v486, 4
          %v509 = vsel %vm505, %v489, %v492
          %v510 = vsel %vm508, %v498, 2102212464
          %v511 = vsel %vm507, %v495, %v510
          %v512 = vsel %vm506, %v509, %v511
          %v513 = vsel %vm505, %v492, %v495
          %v514 = vsel %vm508, %v501, 920167782
          %v515 = vsel %vm507, %v498, %v514
          %v516 = vsel %vm506, %v513, %v515
          %v517 = vsel %vm505, %v495, %v498
          %v518 = vsel %vm508, %v504, 1326507024
          %v519 = vsel %vm507, %v501, %v518
          %v520 = vsel %vm506, %v517, %v519
          %v521 = vshll.u32 %v481, 8
          %v522 = vmul.u32.u64.compose %v521, %v520
          %v523 = vextract.low.u32 %v522
          %v524 = vextract.high.u32 %v522
          %v525 = vmul.u32.u64.compose %v521, %v516
          %v526 = vextract.low.u32 %v525
          %v527 = vextract.high.u32 %v525
          %v528 = vmul.u32 %v521, %v512
          %v529 = vadd.s32 %v524, %v526
          %vm530 = vc.u32 %v524, %v526
          %v531 = vadd.s32 %v527, 1
          %v532 = vsel %vm530, %v531, %v527
          %v533 = vadd.s32 %v528, %v532
          %v534 = vadd.s32 %v533, 536870912
          %v535 = vshrl.u32 %v534, 30
          %v536 = vshll.u32 %v535, 30
          %v537 = vsub.s32 %v533, %v536
          %vm538 = vcmp.lt.s32.totalorder %v537, 0
          %v539 = vsub.s32 0, %v537
          %v540 = vsel %vm538, %v539, %v537
          %v541 = vclz %v540
          %v542 = vsub.s32 %v541, 2
          %vm543 = vcmp.gt.s32.totalorder 0, %v542
          %v544 = vsel %vm543, 0, %v542
          %v545 = vsub.s32 32, %v544
          %v546 = vshll.u32 %v537, %v544
          %v547 = vshrl.u32 %v529, %v545
          %v548 = vor.u32 %v546, %v547
          %v549 = vsub.s32 4294967266, %v544
          %v550 = vadd.s32 %v549, 127
          %v551 = vshll.u32 %v550, 23
          %v552 = vor.u32 4788187, %v551
          %v553 = vand.u32 2147483647, %v552
          %v555 = vcvt.s32.f32 %v548
          %v556 = vmul.f32 %v555, %v553
          %v557 = vxor.u32 %v556, 2147483648
          %v558 = vsel %vm475, %v557, %v556
          %v559 = vsub.s32 4, %v535
          %v560 = vsel %vm475, %v559, %v535
          %v561 = vsel %vm474, %v160, %v558
          %v562 = vsel %vm474, 0, %v560
          %v563 = vcosq.f32.pop %v561
          %v564 = vsinq.f32.pop %v561
          %vm565 = vweird.f32 %v160
          %v566 = vadd.s32 %v562, 3
          %v567 = vand.u32 %v566, 3
          %vm568 = vcmp.lt.s32.totalorder %v567, 2
          %vm569 = vcmp.eq.s32.totalorder %v567, 0
          %v570 = vxor.u32 %v564, 2147483648
          %v571 = vsel %vm569, %v563, %v570
          %vm572 = vcmp.eq.s32.totalorder %v567, 2
          %v573 = vxor.u32 %v563, 2147483648
          %v574 = vsel %vm572, %v573, %v564
          %v575 = vsel %vm568, %v571, %v574
          %v576 = vsel %vm565, nan, %v575
          %v577 = vand.u32 2147483647, %v157
          %vm578 = vcmp.le.f32.partialorder %v577, 0.7853982
          %vm579 = vcmp.lt.s32.totalorder %v157, 0
          %v580 = vand.u32 %v157, 2139095040
          %v581 = vshrl.u32 %v580, 23
          %v582 = vsub.s32 %v581, 127
          %v583 = vand.u32 2147483647, %v157
          %v584 = vand.u32 %v583, 8388607
          %v585 = vor.u32 %v584, 8388608
          %v586 = vsub.s32 0, %v585
          %v587 = vadd.s32 %v582, 1
          %vm588 = vcmp.gt.s32.totalorder %v587, 0
          %v589 = vsel %vm588, %v587, 0
          %v590 = vshrl.u32 %v589, 5
          %v591 = vand.u32 %v589, 31
          %v592 = vsub.s32 32, %v591
          %v593 = vshrl.u32 683565275, %v592
          %v594 = vshll.u32 683565275, %v591
          %v595 = vshrl.u32 2475754826, %v592
          %v596 = vor.u32 %v594, %v595
          %v597 = vshll.u32 2475754826, %v591
          %v598 = vshrl.u32 2131351028, %v592
          %v599 = vor.u32 %v597, %v598
          %v600 = vshll.u32 2131351028, %v591
          %v601 = vshrl.u32 2102212464, %v592
          %v602 = vor.u32 %v600, %v601
          %v603 = vshll.u32 2102212464, %v591
          %v604 = vshrl.u32 920167782, %v592
          %v605 = vor.u32 %v603, %v604
          %v606 = vshll.u32 920167782, %v591
          %v607 = vshrl.u32 1326507024, %v592
          %v608 = vor.u32 %v606, %v607
          %vm609 = vcmp.lt.s32.totalorder %v590, 1
          %vm610 = vcmp.lt.s32.totalorder %v590, 2
          %vm611 = vcmp.lt.s32.totalorder %v590, 3
          %vm612 = vcmp.lt.s32.totalorder %v590, 4
          %v613 = vsel %vm609, %v593, %v596
          %v614 = vsel %vm612, %v602, 2102212464
          %v615 = vsel %vm611, %v599, %v614
          %v616 = vsel %vm610, %v613, %v615
          %v617 = vsel %vm609, %v596, %v599
          %v618 = vsel %vm612, %v605, 920167782
          %v619 = vsel %vm611, %v602, %v618
          %v620 = vsel %vm610, %v617, %v619
          %v621 = vsel %vm609, %v599, %v602
          %v622 = vsel %vm612, %v608, 1326507024
          %v623 = vsel %vm611, %v605, %v622
          %v624 = vsel %vm610, %v621, %v623
          %v625 = vshll.u32 %v585, 8
          %v626 = vmul.u32.u64.compose %v625, %v624
          %v627 = vextract.low.u32 %v626
          %v628 = vextract.high.u32 %v626
          %v629 = vmul.u32.u64.compose %v625, %v620
          %v630 = vextract.low.u32 %v629
          %v631 = vextract.high.u32 %v629
          %v632 = vmul.u32 %v625, %v616
          %v633 = vadd.s32 %v628, %v630
          %vm634 = vc.u32 %v628, %v630
          %v635 = vadd.s32 %v631, 1
          %v636 = vsel %vm634, %v635, %v631
          %v637 = vadd.s32 %v632, %v636
          %v638 = vadd.s32 %v637, 536870912
          %v639 = vshrl.u32 %v638, 30
          %v640 = vshll.u32 %v639, 30
          %v641 = vsub.s32 %v637, %v640
          %vm642 = vcmp.lt.s32.totalorder %v641, 0
          %v643 = vsub.s32 0, %v641
          %v644 = vsel %vm642, %v643, %v641
          %v645 = vclz %v644
          %v646 = vsub.s32 %v645, 2
          %vm647 = vcmp.gt.s32.totalorder 0, %v646
          %v648 = vsel %vm647, 0, %v646
          %v649 = vsub.s32 32, %v648
          %v650 = vshll.u32 %v641, %v648
          %v651 = vshrl.u32 %v633, %v649
          %v652 = vor.u32 %v650, %v651
          %v653 = vsub.s32 4294967266, %v648
          %v654 = vadd.s32 %v653, 127
          %v655 = vshll.u32 %v654, 23
          %v656 = vor.u32 4788187, %v655
          %v657 = vand.u32 2147483647, %v656
          %v659 = vcvt.s32.f32 %v652
          %v660 = vmul.f32 %v659, %v657
          %v661 = vxor.u32 %v660, 2147483648
          %v662 = vsel %vm579, %v661, %v660
          %v663 = vsub.s32 4, %v639
          %v664 = vsel %vm579, %v663, %v639
          %v665 = vsel %vm578, %v157, %v662
          %v666 = vsel %vm578, 0, %v664
          %v667 = vcosq.f32.pop %v665
          %v668 = vsinq.f32.pop %v665
          %vm669 = vweird.f32 %v157
          %v670 = vand.u32 %v666, 3
          %vm671 = vcmp.lt.s32.totalorder %v670, 2
          %vm672 = vcmp.eq.s32.totalorder %v670, 0
          %v673 = vxor.u32 %v668, 2147483648
          %v674 = vsel %vm672, %v667, %v673
          %vm675 = vcmp.eq.s32.totalorder %v670, 2
          %v676 = vxor.u32 %v667, 2147483648
          %v677 = vsel %vm675, %v676, %v668
          %v678 = vsel %vm671, %v674, %v677
          %v679 = vsel %vm669, nan, %v678
          %v680 = vand.u32 2147483647, %v158
          %vm681 = vcmp.le.f32.partialorder %v680, 0.7853982
          %vm682 = vcmp.lt.s32.totalorder %v158, 0
          %v683 = vand.u32 %v158, 2139095040
          %v684 = vshrl.u32 %v683, 23
          %v685 = vsub.s32 %v684, 127
          %v686 = vand.u32 2147483647, %v158
          %v687 = vand.u32 %v686, 8388607
          %v688 = vor.u32 %v687, 8388608
          %v689 = vsub.s32 0, %v688
          %v690 = vadd.s32 %v685, 1
          %vm691 = vcmp.gt.s32.totalorder %v690, 0
          %v692 = vsel %vm691, %v690, 0
          %v693 = vshrl.u32 %v692, 5
          %v694 = vand.u32 %v692, 31
          %v695 = vsub.s32 32, %v694
          %v696 = vshrl.u32 683565275, %v695
          %v697 = vshll.u32 683565275, %v694
          %v698 = vshrl.u32 2475754826, %v695
          %v699 = vor.u32 %v697, %v698
          %v700 = vshll.u32 2475754826, %v694
          %v701 = vshrl.u32 2131351028, %v695
          %v702 = vor.u32 %v700, %v701
          %v703 = vshll.u32 2131351028, %v694
          %v704 = vshrl.u32 2102212464, %v695
          %v705 = vor.u32 %v703, %v704
          %v706 = vshll.u32 2102212464, %v694
          %v707 = vshrl.u32 920167782, %v695
          %v708 = vor.u32 %v706, %v707
          %v709 = vshll.u32 920167782, %v694
          %v710 = vshrl.u32 1326507024, %v695
          %v711 = vor.u32 %v709, %v710
          %vm712 = vcmp.lt.s32.totalorder %v693, 1
          %vm713 = vcmp.lt.s32.totalorder %v693, 2
          %vm714 = vcmp.lt.s32.totalorder %v693, 3
          %vm715 = vcmp.lt.s32.totalorder %v693, 4
          %v716 = vsel %vm712, %v696, %v699
          %v717 = vsel %vm715, %v705, 2102212464
          %v718 = vsel %vm714, %v702, %v717
          %v719 = vsel %vm713, %v716, %v718
          %v720 = vsel %vm712, %v699, %v702
          %v721 = vsel %vm715, %v708, 920167782
          %v722 = vsel %vm714, %v705, %v721
          %v723 = vsel %vm713, %v720, %v722
          %v724 = vsel %vm712, %v702, %v705
          %v725 = vsel %vm715, %v711, 1326507024
          %v726 = vsel %vm714, %v708, %v725
          %v727 = vsel %vm713, %v724, %v726
          %v728 = vshll.u32 %v688, 8
          %v729 = vmul.u32.u64.compose %v728, %v727
          %v730 = vextract.low.u32 %v729
          %v731 = vextract.high.u32 %v729
          %v732 = vmul.u32.u64.compose %v728, %v723
          %v733 = vextract.low.u32 %v732
          %v734 = vextract.high.u32 %v732
          %v735 = vmul.u32 %v728, %v719
          %v736 = vadd.s32 %v731, %v733
          %vm737 = vc.u32 %v731, %v733
          %v738 = vadd.s32 %v734, 1
          %v739 = vsel %vm737, %v738, %v734
          %v740 = vadd.s32 %v735, %v739
          %v741 = vadd.s32 %v740, 536870912
          %v742 = vshrl.u32 %v741, 30
          %v743 = vshll.u32 %v742, 30
          %v744 = vsub.s32 %v740, %v743
          %vm745 = vcmp.lt.s32.totalorder %v744, 0
          %v746 = vsub.s32 0, %v744
          %v747 = vsel %vm745, %v746, %v744
          %v748 = vclz %v747
          %v749 = vsub.s32 %v748, 2
          %vm750 = vcmp.gt.s32.totalorder 0, %v749
          %v751 = vsel %vm750, 0, %v749
          %v752 = vsub.s32 32, %v751
          %v753 = vshll.u32 %v744, %v751
          %v754 = vshrl.u32 %v736, %v752
          %v755 = vor.u32 %v753, %v754
          %v756 = vsub.s32 4294967266, %v751
          %v757 = vadd.s32 %v756, 127
          %v758 = vshll.u32 %v757, 23
          %v759 = vor.u32 4788187, %v758
          %v760 = vand.u32 2147483647, %v759
          %v762 = vcvt.s32.f32 %v755
          %v763 = vmul.f32 %v762, %v760
          %v764 = vxor.u32 %v763, 2147483648
          %v765 = vsel %vm682, %v764, %v763
          %v766 = vsub.s32 4, %v742
          %v767 = vsel %vm682, %v766, %v742
          %v768 = vsel %vm681, %v158, %v765
          %v769 = vsel %vm681, 0, %v767
          %v770 = vcosq.f32.pop %v768
          %v771 = vsinq.f32.pop %v768
          %vm772 = vweird.f32 %v158
          %v773 = vand.u32 %v769, 3
          %vm774 = vcmp.lt.s32.totalorder %v773, 2
          %vm775 = vcmp.eq.s32.totalorder %v773, 0
          %v776 = vxor.u32 %v771, 2147483648
          %v777 = vsel %vm775, %v770, %v776
          %vm778 = vcmp.eq.s32.totalorder %v773, 2
          %v779 = vxor.u32 %v770, 2147483648
          %v780 = vsel %vm778, %v779, %v771
          %v781 = vsel %vm774, %v777, %v780
          %v782 = vsel %vm772, nan, %v781
          %v783 = vand.u32 2147483647, %v159
          %vm784 = vcmp.le.f32.partialorder %v783, 0.7853982
          %vm785 = vcmp.lt.s32.totalorder %v159, 0
          %v786 = vand.u32 %v159, 2139095040
          %v787 = vshrl.u32 %v786, 23
          %v788 = vsub.s32 %v787, 127
          %v789 = vand.u32 2147483647, %v159
          %v790 = vand.u32 %v789, 8388607
          %v791 = vor.u32 %v790, 8388608
          %v792 = vsub.s32 0, %v791
          %v793 = vadd.s32 %v788, 1
          %vm794 = vcmp.gt.s32.totalorder %v793, 0
          %v795 = vsel %vm794, %v793, 0
          %v796 = vshrl.u32 %v795, 5
          %v797 = vand.u32 %v795, 31
          %v798 = vsub.s32 32, %v797
          %v799 = vshrl.u32 683565275, %v798
          %v800 = vshll.u32 683565275, %v797
          %v801 = vshrl.u32 2475754826, %v798
          %v802 = vor.u32 %v800, %v801
          %v803 = vshll.u32 2475754826, %v797
          %v804 = vshrl.u32 2131351028, %v798
          %v805 = vor.u32 %v803, %v804
          %v806 = vshll.u32 2131351028, %v797
          %v807 = vshrl.u32 2102212464, %v798
          %v808 = vor.u32 %v806, %v807
          %v809 = vshll.u32 2102212464, %v797
          %v810 = vshrl.u32 920167782, %v798
          %v811 = vor.u32 %v809, %v810
          %v812 = vshll.u32 920167782, %v797
          %v813 = vshrl.u32 1326507024, %v798
          %v814 = vor.u32 %v812, %v813
          %vm815 = vcmp.lt.s32.totalorder %v796, 1
          %vm816 = vcmp.lt.s32.totalorder %v796, 2
          %vm817 = vcmp.lt.s32.totalorder %v796, 3
          %vm818 = vcmp.lt.s32.totalorder %v796, 4
          %v819 = vsel %vm815, %v799, %v802
          %v820 = vsel %vm818, %v808, 2102212464
          %v821 = vsel %vm817, %v805, %v820
          %v822 = vsel %vm816, %v819, %v821
          %v823 = vsel %vm815, %v802, %v805
          %v824 = vsel %vm818, %v811, 920167782
          %v825 = vsel %vm817, %v808, %v824
          %v826 = vsel %vm816, %v823, %v825
          %v827 = vsel %vm815, %v805, %v808
          %v828 = vsel %vm818, %v814, 1326507024
          %v829 = vsel %vm817, %v811, %v828
          %v830 = vsel %vm816, %v827, %v829
          %v831 = vshll.u32 %v791, 8
          %v832 = vmul.u32.u64.compose %v831, %v830
          %v833 = vextract.low.u32 %v832
          %v834 = vextract.high.u32 %v832
          %v835 = vmul.u32.u64.compose %v831, %v826
          %v836 = vextract.low.u32 %v835
          %v837 = vextract.high.u32 %v835
          %v838 = vmul.u32 %v831, %v822
          %v839 = vadd.s32 %v834, %v836
          %vm840 = vc.u32 %v834, %v836
          %v841 = vadd.s32 %v837, 1
          %v842 = vsel %vm840, %v841, %v837
          %v843 = vadd.s32 %v838, %v842
          %v844 = vadd.s32 %v843, 536870912
          %v845 = vshrl.u32 %v844, 30
          %v846 = vshll.u32 %v845, 30
          %v847 = vsub.s32 %v843, %v846
          %vm848 = vcmp.lt.s32.totalorder %v847, 0
          %v849 = vsub.s32 0, %v847
          %v850 = vsel %vm848, %v849, %v847
          %v851 = vclz %v850
          %v852 = vsub.s32 %v851, 2
          %vm853 = vcmp.gt.s32.totalorder 0, %v852
          %v854 = vsel %vm853, 0, %v852
          %v855 = vsub.s32 32, %v854
          %v856 = vshll.u32 %v847, %v854
          %v857 = vshrl.u32 %v839, %v855
          %v858 = vor.u32 %v856, %v857
          %v859 = vsub.s32 4294967266, %v854
          %v860 = vadd.s32 %v859, 127
          %v861 = vshll.u32 %v860, 23
          %v862 = vor.u32 4788187, %v861
          %v863 = vand.u32 2147483647, %v862
          %v865 = vcvt.s32.f32 %v858
          %v866 = vmul.f32 %v865, %v863
          %v867 = vxor.u32 %v866, 2147483648
          %v868 = vsel %vm785, %v867, %v866
          %v869 = vsub.s32 4, %v845
          %v870 = vsel %vm785, %v869, %v845
          %v871 = vsel %vm784, %v159, %v868
          %v872 = vsel %vm784, 0, %v870
          %v873 = vcosq.f32.pop %v871
          %v874 = vsinq.f32.pop %v871
          %vm875 = vweird.f32 %v159
          %v876 = vand.u32 %v872, 3
          %vm877 = vcmp.lt.s32.totalorder %v876, 2
          %vm878 = vcmp.eq.s32.totalorder %v876, 0
          %v879 = vxor.u32 %v874, 2147483648
          %v880 = vsel %vm878, %v873, %v879
          %vm881 = vcmp.eq.s32.totalorder %v876, 2
          %v882 = vxor.u32 %v873, 2147483648
          %v883 = vsel %vm881, %v882, %v874
          %v884 = vsel %vm877, %v880, %v883
          %v885 = vsel %vm875, nan, %v884
          %v886 = vand.u32 2147483647, %v160
          %vm887 = vcmp.le.f32.partialorder %v886, 0.7853982
          %vm888 = vcmp.lt.s32.totalorder %v160, 0
          %v889 = vand.u32 %v160, 2139095040
          %v890 = vshrl.u32 %v889, 23
          %v891 = vsub.s32 %v890, 127
          %v892 = vand.u32 2147483647, %v160
          %v893 = vand.u32 %v892, 8388607
          %v894 = vor.u32 %v893, 8388608
          %v895 = vsub.s32 0, %v894
          %v896 = vadd.s32 %v891, 1
          %vm897 = vcmp.gt.s32.totalorder %v896, 0
          %v898 = vsel %vm897, %v896, 0
          %v899 = vshrl.u32 %v898, 5
          %v900 = vand.u32 %v898, 31
          %v901 = vsub.s32 32, %v900
          %v902 = vshrl.u32 683565275, %v901
          %v903 = vshll.u32 683565275, %v900
          %v904 = vshrl.u32 2475754826, %v901
          %v905 = vor.u32 %v903, %v904
          %v906 = vshll.u32 2475754826, %v900
          %v907 = vshrl.u32 2131351028, %v901
          %v908 = vor.u32 %v906, %v907
          %v909 = vshll.u32 2131351028, %v900
          %v910 = vshrl.u32 2102212464, %v901
          %v911 = vor.u32 %v909, %v910
          %v912 = vshll.u32 2102212464, %v900
          %v913 = vshrl.u32 920167782, %v901
          %v914 = vor.u32 %v912, %v913
          %v915 = vshll.u32 920167782, %v900
          %v916 = vshrl.u32 1326507024, %v901
          %v917 = vor.u32 %v915, %v916
          %vm918 = vcmp.lt.s32.totalorder %v899, 1
          %vm919 = vcmp.lt.s32.totalorder %v899, 2
          %vm920 = vcmp.lt.s32.totalorder %v899, 3
          %vm921 = vcmp.lt.s32.totalorder %v899, 4
          %v922 = vsel %vm918, %v902, %v905
          %v923 = vsel %vm921, %v911, 2102212464
          %v924 = vsel %vm920, %v908, %v923
          %v925 = vsel %vm919, %v922, %v924
          %v926 = vsel %vm918, %v905, %v908
          %v927 = vsel %vm921, %v914, 920167782
          %v928 = vsel %vm920, %v911, %v927
          %v929 = vsel %vm919, %v926, %v928
          %v930 = vsel %vm918, %v908, %v911
          %v931 = vsel %vm921, %v917, 1326507024
          %v932 = vsel %vm920, %v914, %v931
          %v933 = vsel %vm919, %v930, %v932
          %v934 = vshll.u32 %v894, 8
          %v935 = vmul.u32.u64.compose %v934, %v933
          %v936 = vextract.low.u32 %v935
          %v937 = vextract.high.u32 %v935
          %v938 = vmul.u32.u64.compose %v934, %v929
          %v939 = vextract.low.u32 %v938
          %v940 = vextract.high.u32 %v938
          %v941 = vmul.u32 %v934, %v925
          %v942 = vadd.s32 %v937, %v939
          %vm943 = vc.u32 %v937, %v939
          %v944 = vadd.s32 %v940, 1
          %v945 = vsel %vm943, %v944, %v940
          %v946 = vadd.s32 %v941, %v945
          %v947 = vadd.s32 %v946, 536870912
          %v948 = vshrl.u32 %v947, 30
          %v949 = vshll.u32 %v948, 30
          %v950 = vsub.s32 %v946, %v949
          %vm951 = vcmp.lt.s32.totalorder %v950, 0
          %v952 = vsub.s32 0, %v950
          %v953 = vsel %vm951, %v952, %v950
          %v954 = vclz %v953
          %v955 = vsub.s32 %v954, 2
          %vm956 = vcmp.gt.s32.totalorder 0, %v955
          %v957 = vsel %vm956, 0, %v955
          %v958 = vsub.s32 32, %v957
          %v959 = vshll.u32 %v950, %v957
          %v960 = vshrl.u32 %v942, %v958
          %v961 = vor.u32 %v959, %v960
          %v962 = vsub.s32 4294967266, %v957
          %v963 = vadd.s32 %v962, 127
          %v964 = vshll.u32 %v963, 23
          %v965 = vor.u32 4788187, %v964
          %v966 = vand.u32 2147483647, %v965
          %v968 = vcvt.s32.f32 %v961
          %v969 = vmul.f32 %v968, %v966
          %v970 = vxor.u32 %v969, 2147483648
          %v971 = vsel %vm888, %v970, %v969
          %v972 = vsub.s32 4, %v948
          %v973 = vsel %vm888, %v972, %v948
          %v974 = vsel %vm887, %v160, %v971
          %v975 = vsel %vm887, 0, %v973
          %v976 = vcosq.f32.pop %v974
          %v977 = vsinq.f32.pop %v974
          %vm978 = vweird.f32 %v160
          %v979 = vand.u32 %v975, 3
          %vm980 = vcmp.lt.s32.totalorder %v979, 2
          %vm981 = vcmp.eq.s32.totalorder %v979, 0
          %v982 = vxor.u32 %v977, 2147483648
          %v983 = vsel %vm981, %v976, %v982
          %vm984 = vcmp.eq.s32.totalorder %v979, 2
          %v985 = vxor.u32 %v976, 2147483648
          %v986 = vsel %vm984, %v985, %v977
          %v987 = vsel %vm980, %v983, %v986
          %v988 = vsel %vm978, nan, %v987
          %s989 = scalar_lea.vmem %s107, %s122 [#allocation5]
          %990 = vst [vmem:[%s989] sm:$0xff] %v264
          %991 = vst [vmem:[%s989 + $0x8] sm:$0xff] %v368
          %992 = vst [vmem:[%s989 + $0x10] sm:$0xff] %v472
          %993 = vst [vmem:[%s989 + $0x18] sm:$0xff] %v576
          %v994 = vlaneseq
          %v995 = vshrl.u32 %v994, 7
          %v996 = vsub.s32 3, %v995
          %v997 = vrot.slane %v109, %v996
          %v998 = vmul.f32 %v264, %v997
          %v999 = vmul.f32 %v368, %v997
          %v1000 = vmul.f32 %v472, %v997
          %v1001 = vmul.f32 %v576, %v997
          %v1002 = vlaneseq
          %v1003 = vshrl.u32 %v1002, 7
          %v1004 = vsub.s32 4, %v1003
          %v1005 = vrot.slane %v109, %v1004
          %v1006 = vmul.f32 %v679, %v1005
          %v1007 = vmul.f32 %v782, %v1005
          %v1008 = vmul.f32 %v885, %v1005
          %v1009 = vmul.f32 %v988, %v1005
          %v1010 = vadd.f32 %v998, %v1006
          %v1011 = vadd.f32 %v999, %v1007
          %v1012 = vadd.f32 %v1000, %v1008
          %v1013 = vadd.f32 %v1001, %v1009
          %v1014 = vmul.f32 %v679, %v997
          %v1015 = vmul.f32 %v782, %v997
          %v1016 = vmul.f32 %v885, %v997
          %v1017 = vmul.f32 %v988, %v997
          %v1018 = vmul.f32 %v264, %v1005
          %v1019 = vmul.f32 %v368, %v1005
          %v1020 = vmul.f32 %v472, %v1005
          %v1021 = vmul.f32 %v576, %v1005
          %v1022 = vsub.f32 %v1014, %v1018
          %v1023 = vsub.f32 %v1015, %v1019
          %v1024 = vsub.f32 %v1016, %v1020
          %v1025 = vsub.f32 %v1017, %v1021
          %s1026 = sadd.s32 %s122, 32
          %s1027 = scalar_lea.vmem %s107, %s1026 [#allocation5]
          %1028 = vst [vmem:[%s1027] sm:$0xff] %v1010
          %1029 = vst [vmem:[%s1027 + $0x8] sm:$0xff] %v1011
          %1030 = vst [vmem:[%s1027 + $0x10] sm:$0xff] %v1012
          %1031 = vst [vmem:[%s1027 + $0x18] sm:$0xff] %v1013
          %v1032 = vmul.f32 %v1010, %v997
          %v1033 = vmul.f32 %v1011, %v997
          %v1034 = vmul.f32 %v1012, %v997
          %v1035 = vmul.f32 %v1013, %v997
          %v1036 = vmul.f32 %v1022, %v1005
          %v1037 = vmul.f32 %v1023, %v1005
          %v1038 = vmul.f32 %v1024, %v1005
          %v1039 = vmul.f32 %v1025, %v1005
          %v1040 = vadd.f32 %v1032, %v1036
          %v1041 = vadd.f32 %v1033, %v1037
          %v1042 = vadd.f32 %v1034, %v1038
          %v1043 = vadd.f32 %v1035, %v1039
          %v1044 = vmul.f32 %v1022, %v997
          %v1045 = vmul.f32 %v1023, %v997
          %v1046 = vmul.f32 %v1024, %v997
          %v1047 = vmul.f32 %v1025, %v997
          %v1048 = vmul.f32 %v1010, %v1005
          %v1049 = vmul.f32 %v1011, %v1005
          %v1050 = vmul.f32 %v1012, %v1005
          %v1051 = vmul.f32 %v1013, %v1005
          %v1052 = vsub.f32 %v1044, %v1048
          %v1053 = vsub.f32 %v1045, %v1049
          %v1054 = vsub.f32 %v1046, %v1050
          %v1055 = vsub.f32 %v1047, %v1051
          %s1056 = sadd.s32 %s122, 64
          %s1057 = scalar_lea.vmem %s107, %s1056 [#allocation5]
          %1058 = vst [vmem:[%s1057] sm:$0xff] %v1040
          %1059 = vst [vmem:[%s1057 + $0x8] sm:$0xff] %v1041
          %1060 = vst [vmem:[%s1057 + $0x10] sm:$0xff] %v1042
          %1061 = vst [vmem:[%s1057 + $0x18] sm:$0xff] %v1043
          %v1062 = vmul.f32 %v1040, %v997
          %v1063 = vmul.f32 %v1041, %v997
          %v1064 = vmul.f32 %v1042, %v997
          %v1065 = vmul.f32 %v1043, %v997
          %v1066 = vmul.f32 %v1052, %v1005
          %v1067 = vmul.f32 %v1053, %v1005
          %v1068 = vmul.f32 %v1054, %v1005
          %v1069 = vmul.f32 %v1055, %v1005
          %v1070 = vadd.f32 %v1062, %v1066
          %v1071 = vadd.f32 %v1063, %v1067
          %v1072 = vadd.f32 %v1064, %v1068
          %v1073 = vadd.f32 %v1065, %v1069
          %v1074 = vmul.f32 %v1052, %v997
          %v1075 = vmul.f32 %v1053, %v997
          %v1076 = vmul.f32 %v1054, %v997
          %v1077 = vmul.f32 %v1055, %v997
          %v1078 = vmul.f32 %v1040, %v1005
          %v1079 = vmul.f32 %v1041, %v1005
          %v1080 = vmul.f32 %v1042, %v1005
          %v1081 = vmul.f32 %v1043, %v1005
          %v1082 = vsub.f32 %v1074, %v1078
          %v1083 = vsub.f32 %v1075, %v1079
          %v1084 = vsub.f32 %v1076, %v1080
          %v1085 = vsub.f32 %v1077, %v1081
          %s1086 = sadd.s32 %s122, 96
          %s1087 = scalar_lea.vmem %s107, %s1086 [#allocation5]
          %1088 = vst [vmem:[%s1087] sm:$0xff] %v1070
          %1089 = vst [vmem:[%s1087 + $0x8] sm:$0xff] %v1071
          %1090 = vst [vmem:[%s1087 + $0x10] sm:$0xff] %v1072
          %1091 = vst [vmem:[%s1087 + $0x18] sm:$0xff] %v1073
          %v1092 = vmul.f32 %v1070, %v997
          %v1093 = vmul.f32 %v1071, %v997
          %v1094 = vmul.f32 %v1072, %v997
          %v1095 = vmul.f32 %v1073, %v997
          %v1096 = vmul.f32 %v1082, %v1005
          %v1097 = vmul.f32 %v1083, %v1005
          %v1098 = vmul.f32 %v1084, %v1005
          %v1099 = vmul.f32 %v1085, %v1005
          %v1100 = vadd.f32 %v1092, %v1096
          %v1101 = vadd.f32 %v1093, %v1097
          %v1102 = vadd.f32 %v1094, %v1098
          %v1103 = vadd.f32 %v1095, %v1099
          %v1104 = vmul.f32 %v1082, %v997
          %v1105 = vmul.f32 %v1083, %v997
          %v1106 = vmul.f32 %v1084, %v997
          %v1107 = vmul.f32 %v1085, %v997
          %v1108 = vmul.f32 %v1070, %v1005
          %v1109 = vmul.f32 %v1071, %v1005
          %v1110 = vmul.f32 %v1072, %v1005
          %v1111 = vmul.f32 %v1073, %v1005
          %v1112 = vsub.f32 %v1104, %v1108
          %v1113 = vsub.f32 %v1105, %v1109
          %v1114 = vsub.f32 %v1106, %v1110
          %v1115 = vsub.f32 %v1107, %v1111
          %s1116 = sadd.s32 %s122, 128
          %s1117 = scalar_lea.vmem %s107, %s1116 [#allocation5]
          %1118 = vst [vmem:[%s1117] sm:$0xff] %v1100
          %1119 = vst [vmem:[%s1117 + $0x8] sm:$0xff] %v1101
          %1120 = vst [vmem:[%s1117 + $0x10] sm:$0xff] %v1102
          %1121 = vst [vmem:[%s1117 + $0x18] sm:$0xff] %v1103
          %v1122 = vmul.f32 %v1100, %v997
          %v1123 = vmul.f32 %v1101, %v997
          %v1124 = vmul.f32 %v1102, %v997
          %v1125 = vmul.f32 %v1103, %v997
          %v1126 = vmul.f32 %v1112, %v1005
          %v1127 = vmul.f32 %v1113, %v1005
          %v1128 = vmul.f32 %v1114, %v1005
          %v1129 = vmul.f32 %v1115, %v1005
          %v1130 = vadd.f32 %v1122, %v1126
          %v1131 = vadd.f32 %v1123, %v1127
          %v1132 = vadd.f32 %v1124, %v1128
          %v1133 = vadd.f32 %v1125, %v1129
          %v1134 = vmul.f32 %v1112, %v997
          %v1135 = vmul.f32 %v1113, %v997
          %v1136 = vmul.f32 %v1114, %v997
          %v1137 = vmul.f32 %v1115, %v997
          %v1138 = vmul.f32 %v1100, %v1005
          %v1139 = vmul.f32 %v1101, %v1005
          %v1140 = vmul.f32 %v1102, %v1005
          %v1141 = vmul.f32 %v1103, %v1005
          %v1142 = vsub.f32 %v1134, %v1138
          %v1143 = vsub.f32 %v1135, %v1139
          %v1144 = vsub.f32 %v1136, %v1140
          %v1145 = vsub.f32 %v1137, %v1141
          %s1146 = sadd.s32 %s122, 160
          %s1147 = scalar_lea.vmem %s107, %s1146 [#allocation5]
          %1148 = vst [vmem:[%s1147] sm:$0xff] %v1130
          %1149 = vst [vmem:[%s1147 + $0x8] sm:$0xff] %v1131
          %1150 = vst [vmem:[%s1147 + $0x10] sm:$0xff] %v1132
          %1151 = vst [vmem:[%s1147 + $0x18] sm:$0xff] %v1133
          %v1152 = vmul.f32 %v1130, %v997
          %v1153 = vmul.f32 %v1131, %v997
          %v1154 = vmul.f32 %v1132, %v997
          %v1155 = vmul.f32 %v1133, %v997
          %v1156 = vmul.f32 %v1142, %v1005
          %v1157 = vmul.f32 %v1143, %v1005
          %v1158 = vmul.f32 %v1144, %v1005
          %v1159 = vmul.f32 %v1145, %v1005
          %v1160 = vadd.f32 %v1152, %v1156
          %v1161 = vadd.f32 %v1153, %v1157
          %v1162 = vadd.f32 %v1154, %v1158
          %v1163 = vadd.f32 %v1155, %v1159
          %v1164 = vmul.f32 %v1142, %v997
          %v1165 = vmul.f32 %v1143, %v997
          %v1166 = vmul.f32 %v1144, %v997
          %v1167 = vmul.f32 %v1145, %v997
          %v1168 = vmul.f32 %v1130, %v1005
          %v1169 = vmul.f32 %v1131, %v1005
          %v1170 = vmul.f32 %v1132, %v1005
          %v1171 = vmul.f32 %v1133, %v1005
          %v1172 = vsub.f32 %v1164, %v1168
          %v1173 = vsub.f32 %v1165, %v1169
          %v1174 = vsub.f32 %v1166, %v1170
          %v1175 = vsub.f32 %v1167, %v1171
          %s1176 = sadd.s32 %s122, 192
          %s1177 = scalar_lea.vmem %s107, %s1176 [#allocation5]
          %1178 = vst [vmem:[%s1177] sm:$0xff] %v1160
          %1179 = vst [vmem:[%s1177 + $0x8] sm:$0xff] %v1161
          %1180 = vst [vmem:[%s1177 + $0x10] sm:$0xff] %v1162
          %1181 = vst [vmem:[%s1177 + $0x18] sm:$0xff] %v1163
          %v1182 = vmul.f32 %v1160, %v997
          %v1183 = vmul.f32 %v1161, %v997
          %v1184 = vmul.f32 %v1162, %v997
          %v1185 = vmul.f32 %v1163, %v997
          %v1186 = vmul.f32 %v1172, %v1005
          %v1187 = vmul.f32 %v1173, %v1005
          %v1188 = vmul.f32 %v1174, %v1005
          %v1189 = vmul.f32 %v1175, %v1005
          %v1190 = vadd.f32 %v1182, %v1186
          %v1191 = vadd.f32 %v1183, %v1187
          %v1192 = vadd.f32 %v1184, %v1188
          %v1193 = vadd.f32 %v1185, %v1189
          %s1194 = sadd.s32 %s122, 224
          %s1195 = scalar_lea.vmem %s107, %s1194 [#allocation5]
          %1196 = vst [vmem:[%s1195] sm:$0xff] %v1190
          %1197 = vst [vmem:[%s1195 + $0x8] sm:$0xff] %v1191
          %1198 = vst [vmem:[%s1195 + $0x10] sm:$0xff] %v1192
          %1199 = vst [vmem:[%s1195 + $0x18] sm:$0xff] %v1193
        $region33: #{tpu_custom_call.1} parent=23 // loop_footer
          %s121 = sadd.s32 1, %s117
        $region34: #{tpu_custom_call.1} parent=23 // loop_footer_branch
          %116 = sbr.rel target = $region30
        $region35: #{tpu_custom_call.1} parent=23 // loop_exit
          _
        %s1200 = sand.u32 %s45, 1
        %s1201 = scalar_lea.sflag [#allocation4], %s1200
        %s1202 = sand.u32 %s45, 1
        %s1203 = smul.addr %s1202, 768
        %s1204 = scalar_lea.vmem [#allocation5], %s1203
        // Predicated region
        $region36: #{tpu_custom_call.1} parent=23 // pred_check
          %p1205 = pneg %p55
        $region37: #{tpu_custom_call.1} parent=23 // pred_check_branch
          %1207 = sbr.rel (%p1205) target = $region39
        $region38: #{tpu_custom_call.1} parent=23 // pred_region
          %s1208 = smul.u32 96, %s16
          %s1210 = ssub.s32 12288, 12288
          %1211 = vsyncadd %s1201, %s1210
          %s1212 = smul.addr %s1208, 128
          %s1213 = scalar_lea.hbm %s1, %s1212
          %s1214 = sshll.u32 %s1204, 4
          %s1215 = int_to_ptr.vmem [resolvable:$true] %s1214
          %1220 = dma.vmem_to_hbm [thread:$0]  %s1215, 12288, %s1213, %s1201, 128, 128, 8
        $region39: #{tpu_custom_call.1} parent=23 // pred_fallthru
          _
      $region24: #{tpu_custom_call.1} parent=5 // pred_fallthru
        _
      %p1221 = scmp.le.s32.totalorder 2, %s11
      // Predicated region
      $region40: #{tpu_custom_call.1} parent=5 // pred_check
        %p1222 = pneg %p1221
      $region41: #{tpu_custom_call.1} parent=5 // pred_check_branch
        %1224 = sbr.rel (%p1222) target = $region43
      $region42: #{tpu_custom_call.1} parent=5 // pred_region
        %s1225 = ssub.s32 %s11, 2
        // Predicated region
        $region44: #{tpu_custom_call.1} parent=42 // pred_check
          %p1226 = pneg %p61
        $region45: #{tpu_custom_call.1} parent=42 // pred_check_branch
          %1228 = sbr.rel (%p1226) target = $region47
        $region46: #{tpu_custom_call.1} parent=42 // pred_region
          %s1229 = sand.u32 %s46, 1
          %s1230 = scalar_lea.sflag [#allocation4], %s1229
          %s1231 = sand.u32 %s46, 1
          %s1232 = smul.addr %s1231, 768
          %s1233 = scalar_lea.vmem [#allocation5], %s1232
          %1234 = dma.done %s1230, 12288
        $region47: #{tpu_custom_call.1} parent=42 // pred_fallthru
          _
      $region43: #{tpu_custom_call.1} parent=5 // pred_fallthru
        _
    $region6: #{tpu_custom_call.1} parent=1 // loop_footer
      %s15 = sadd.s32 1, %s11
    $region7: #{tpu_custom_call.1} parent=1 // loop_footer_branch
      %10 = sbr.rel target = $region3
    $region8: #{tpu_custom_call.1} parent=1 // loop_exit
      _
    %1235 = vsyncpa [#allocation3], 1
    %s1236 = scalar_lea.sflag [#allocation3], 1
    %1237 = vsyncpa %s1236, 1
    %1238 = vsyncpa [#allocation4], 1
    %s1239 = scalar_lea.sflag [#allocation4], 1
    %1240 = vsyncpa %s1239, 1

</llo_original>
